<compile_context>
chip_gen: v6e
topology: v6e:2x2x1
jax: 0.10.0
libtpu: 0.0.40
codegen_flags: <defaults>
</compile_context>

<pallas_src>
import jax
import jax.numpy as jnp
from jax.experimental import pallas as pl
from jax.experimental.pallas import tpu as pltpu


def _custom_op_kernel(x_ref, o_ref):
    # forward of CustomOp: y = relu(x); out = y / (1 + exp(-y))
    # compute in f32 (explicit widening keeps v5e's no-bf16 VPU/EUP predictable)
    x = x_ref[...].astype(jnp.float32)
    y = jnp.maximum(x, 0.0)
    out = y / (1.0 + jnp.exp(-y))          # exp -> EUP slot; exact divide (mem-bound anyway)
    o_ref[...] = out.astype(o_ref.dtype)


def _run_2d(x2d: jax.Array, tile_rows: int) -> jax.Array:
    rows, lane = x2d.shape
    grid = (pl.cdiv(rows, tile_rows),)
    return pl.pallas_call(
        _custom_op_kernel,
        out_shape=jax.ShapeDtypeStruct((rows, lane), x2d.dtype),
        grid=grid,
        in_specs=[pl.BlockSpec((tile_rows, lane), lambda i: (i, 0))],
        out_specs=pl.BlockSpec((tile_rows, lane), lambda i: (i, 0)),
        compiler_params=pltpu.CompilerParams(
            dimension_semantics=("parallel",),  # megacore-shardable on v7x
        ),
    )(x2d)


def custom_op(x: jax.Array) -> jax.Array:
    """Pallas TPU implementation of CustomOp.forward: relu(x) then x/(1+exp(-x))."""
    orig_shape = x.shape
    dtype = x.dtype
    total = x.size
    dtype_bytes = jnp.dtype(dtype).itemsize
    # sublane alignment: f32 -> 8 rows, bf16/f16 -> 16, 8-bit -> 32
    sub = max(8, 32 // max(1, dtype_bytes))

    # Fast path: pick the widest lane-dense 2D view that needs NO padding copy.
    lane = None
    for cand in (512, 256, 128):
        if total % (sub * cand) == 0:
            lane = cand
            break

    if lane is not None:
        rows = total // lane
        x2d = jnp.reshape(x, (rows, lane))       # contiguous reshape: no HBM copy
        padded = None
    else:
        # Ragged tail fallback: pad only to the next (sub, 128)-aligned slab.
        # TODO(synk): handle the tail in-kernel (scalar-prefetched valid length
        # + masked store) to drop this extra pad/slice HBM pass entirely.
        lane = 128
        unit = sub * lane
        padded = pl.cdiv(total, unit) * unit
        x_flat = jnp.reshape(x, (total,))
        x_flat = jnp.pad(x_flat, (0, padded - total))
        rows = padded // lane
        x2d = jnp.reshape(x_flat, (rows, lane))

    # ~1 MiB blocks: amortizes the ~0.35 us per-grid-step overhead while staying
    # far inside VMEM (in+out, double-buffered ≈ 4 MiB live) on every generation.
    target_rows = max(sub, ((1 << 20) // (lane * dtype_bytes)) // sub * sub)
    tile_rows = min(rows, target_rows)
    # Keep >= 2 grid steps when possible so both v7x TensorCores stream HBM.
    if rows > sub and pl.cdiv(rows, tile_rows) < 2:
        tile_rows = max(sub, (((rows + 1) // 2) + sub - 1) // sub * sub)

    out2d = _run_2d(x2d, tile_rows)

    if padded is None:
        return jnp.reshape(out2d, orig_shape)
    out_flat = jnp.reshape(out2d, (padded,))[:total]
    return jnp.reshape(out_flat, orig_shape)


class Model:
    """JAX mirror of the PyTorch Model: forward(x) = CustomOp(x)."""

    def __call__(self, x):
        return custom_op(x)


if __name__ == "__main__":
    key = jax.random.PRNGKey(0)
    # small NCHW input consistent with a conv-style tensor
    x = jax.random.normal(key, (2, 4, 16, 16), dtype=jnp.float32)

    model = Model()
    out = model(x)
    out = jax.block_until_ready(out)

    # reference check in plain JAX
    y_ref = jnp.maximum(x, 0.0)
    ref = y_ref / (1.0 + jnp.exp(-y_ref))
    assert out.shape == x.shape and out.dtype == x.dtype
    assert jnp.allclose(out, ref, rtol=1e-4, atol=1e-6), (
        float(jnp.max(jnp.abs(out - ref)))
    )

    print("KERNEL_OK")
</pallas_src>

<mosaic_0001>
module attributes {stable_mosaic.version = 11 : i64} {
  func.func @_custom_op_kernel(%arg0: i32, %arg1: memref<8x256xf32, #tpu.memory_space<vmem>>, %arg2: memref<8x256xf32, #tpu.memory_space<vmem>>) attributes {dimension_semantics = [#tpu.dimension_semantics<parallel>], iteration_bounds = array<i64: 1>, scalar_prefetch = 0 : i64, scratch_operands = 0 : i64, tpu.core_type = #tpu.core_type<tc>, window_params = [{transform_indices = @transform_0, window_bounds = array<i64: 8, 256>}, {transform_indices = @transform_1, window_bounds = array<i64: 8, 256>}]} {
    %c0 = arith.constant 0 : index
    %c0_0 = arith.constant 0 : index
    %0 = vector.load %arg1[%c0, %c0_0] : memref<8x256xf32, #tpu.memory_space<vmem>>, vector<8x256xf32>
    %cst = arith.constant 0.000000e+00 : f32
    %1 = vector.broadcast %cst : f32 to vector<8x256xf32>
    %2 = arith.maximumf %0, %1 : vector<8x256xf32>
    %cst_1 = arith.constant 0.000000e+00 : f32
    %3 = vector.broadcast %cst_1 : f32 to vector<8x256xf32>
    %4 = arith.subf %3, %2 : vector<8x256xf32>
    %5 = math.exp %4 : vector<8x256xf32>
    %cst_2 = arith.constant 1.000000e+00 : f32
    %6 = vector.broadcast %cst_2 : f32 to vector<8x256xf32>
    %7 = arith.addf %6, %5 : vector<8x256xf32>
    %8 = arith.divf %2, %7 : vector<8x256xf32>
    %c0_3 = arith.constant 0 : index
    %c0_4 = arith.constant 0 : index
    %9 = vector.load %arg2[%c0_3, %c0_4] : memref<8x256xf32, #tpu.memory_space<vmem>>, vector<8x256xf32>
    tpu.vector_store %arg2[%c0_3, %c0_4], %8 {strides = array<i32>} : memref<8x256xf32, #tpu.memory_space<vmem>>, vector<8x256xf32>,
    return
  }
  func.func @transform_0(%arg0: i32) -> (i32, i32) {
    %c0_i32 = arith.constant 0 : i32
    %c0_i32_0 = arith.constant 0 : i32
    return %arg0, %c0_i32 : i32, i32
  }
  func.func @transform_1(%arg0: i32) -> (i32, i32) {
    %c0_i32 = arith.constant 0 : i32
    %c0_i32_0 = arith.constant 0 : i32
    return %arg0, %c0_i32 : i32, i32
  }
}

</mosaic_0001>

<llo_original>
// kernel: tpu_custom_call.1
$region0: #{tpu_custom_call.1}
  #allocation0 [shape = 'u32[]', space=smem, size = 0x4, offset = 0x4, fixed_abs, tag = 'smem constant byte address 0x4 - core index']
  #allocation1 [shape = 'u32[144,128]{1,0:T(1,128)}', space=vmem, size = 0x12000, scoped, tag = 'internal scratch']
  %s0 = inlined_call_operand.hbm [shape: f32[8,256], index: 0, kind: input, shape index: {}]
  %s1 = inlined_call_operand.hbm [shape: f32[8,256], index: 1, kind: output, shape index: {}]
  %s2 = sld [smem:[#allocation0]]
  $region18: #{tpu_custom_call.1} parent=0
    _
  %s4 = ssub.s32 1, %s2
  %s5 = scalar_select 0, %s4, %s2
  $region1: #{tpu_custom_call.1} parent=0
    #allocation2 [shape = 'u8[8192]{0}', space=vmem, size = 0x2000, scoped, tag = 'input window, operand 0, single buffered']
    #allocation3 [shape = 's32[1]{0}', space=sflag, size = 0x4, scoped, tag = 'scoped memory for tpu_custom_call.1']
    #allocation4 [shape = 's32[1]{0}', space=sflag, size = 0x4, scoped, tag = 'scoped memory for tpu_custom_call.1']
    #allocation5 [shape = 'u8[8192]{0}', space=vmem, size = 0x2000, scoped, tag = 'output window, operand 0, single buffered']
    %6 = vsyncpa [#allocation3], 0
    %7 = vsyncpa [#allocation4], 0
    // Predicated region
    $region2: #{tpu_custom_call.1} parent=1 // pred_check
      _
    $region3: #{tpu_custom_call.1} parent=1 // pred_check_branch
      %9 = sbr.rel (0) target = $region5
    $region4: #{tpu_custom_call.1} parent=1 // pred_region
      %s11 = ssub.s32 256, 256
      %12 = vsyncadd [#allocation3], %s11
      %s14 = sshll.u32 [#allocation2], 4
      %s15 = int_to_ptr.vmem [resolvable:$true] %s14
      %17 = dma.hbm_to_vmem [thread:$0]  %s0, 256, %s15, [#allocation3]
    $region5: #{tpu_custom_call.1} parent=1 // pred_fallthru
      _
    // Predicated region
    $region6: #{tpu_custom_call.1} parent=1 // pred_check
      _
    $region7: #{tpu_custom_call.1} parent=1 // pred_check_branch
      %19 = sbr.rel (0) target = $region9
    $region8: #{tpu_custom_call.1} parent=1 // pred_region
      %20 = dma.done [#allocation3], 256
    $region9: #{tpu_custom_call.1} parent=1 // pred_fallthru
      _
    %v21 = vld [vmem:[#allocation2] sm:$0xff]
    %v22 = vld [vmem:[#allocation2 + $0x8] sm:$0xff]
    %v23 = vmax.f32 %v21, 0.0
    %v24 = vmax.f32 %v22, 0.0
    %v25 = vsub.f32 0.0, %v23
    %v26 = vsub.f32 0.0, %v24
    %v27 = vmul.f32 %v25, 1.442695
    %v28 = vpow.pop %v27
    %v29 = vmul.f32 %v26, 1.442695
    %v30 = vpow.pop %v29
    %v31 = vadd.f32 %v28, 1.0
    %v32 = vadd.f32 %v30, 1.0
    %v33 = vrcp.pop %v31
    %v34 = vmul.f32 %v23, %v33
    %v35 = vrcp.pop %v32
    %v36 = vmul.f32 %v24, %v35
    %37 = vst [vmem:[#allocation5] sm:$0xff] %v34
    %38 = vst [vmem:[#allocation5 + $0x8] sm:$0xff] %v36
    // Predicated region
    $region10: #{tpu_custom_call.1} parent=1 // pred_check
      _
    $region11: #{tpu_custom_call.1} parent=1 // pred_check_branch
      %40 = sbr.rel (0) target = $region13
    $region12: #{tpu_custom_call.1} parent=1 // pred_region
      %s42 = ssub.s32 256, 256
      %43 = vsyncadd [#allocation4], %s42
      %s45 = sshll.u32 [#allocation5], 4
      %s46 = int_to_ptr.vmem [resolvable:$true] %s45
      %48 = dma.vmem_to_hbm [thread:$0]  %s46, 256, %s1, [#allocation4]
    $region13: #{tpu_custom_call.1} parent=1 // pred_fallthru
      _
    // Predicated region
    $region14: #{tpu_custom_call.1} parent=1 // pred_check
      _
    $region15: #{tpu_custom_call.1} parent=1 // pred_check_branch
      %50 = sbr.rel (0) target = $region17
    $region16: #{tpu_custom_call.1} parent=1 // pred_region
      %51 = dma.done [#allocation4], 256
    $region17: #{tpu_custom_call.1} parent=1 // pred_fallthru
      _
    %52 = vsyncpa [#allocation3], 1
    %53 = vsyncpa [#allocation4], 1

</llo_original>
